<compile_context>
chip_gen: v5e
topology: v5e:2x2
jax: 0.10.0
libtpu: 0.0.40
codegen_flags: <defaults>
</compile_context>

<pallas_src>
import functools
import math

import jax
import jax.numpy as jnp
from jax.experimental import pallas as pl
from jax.experimental.pallas import tpu as pltpu


_X_TILE_TARGET_BYTES = 4 * 1024 * 1024   # per-block x / out tile target
_PE_TILE_CAP_BYTES = 2 * 1024 * 1024     # cap on the (f32) pe tile
_TF_FLOOR_ELEMS = 1024                   # >= 4 KiB contiguous f32 per row; keeps tR % 8 == 0
_VMEM_HEADROOM_BYTES = 8 * 1024 * 1024   # slack for Mosaic internal scratch

_CORE_PARALLEL = getattr(pltpu, "CORE_PARALLEL", None)
_ARBITRARY = getattr(pltpu, "ARBITRARY", "arbitrary")


def _build_pe_table(d_model: int, max_len: int = 5000) -> jnp.ndarray:
    """Deterministic sinusoidal table, identical to the PyTorch __init__ (f32)."""
    position = jnp.arange(0, max_len, dtype=jnp.float32)[:, None]
    div_term = jnp.exp(
        jnp.arange(0, d_model, 2, dtype=jnp.float32) * (-math.log(10000.0) / d_model)
    )
    angles = position * div_term
    pe = jnp.zeros((max_len, d_model), dtype=jnp.float32)
    pe = pe.at[:, 0::2].set(jnp.sin(angles))
    pe = pe.at[:, 1::2].set(jnp.cos(angles))
    return pe


def _add_pe_kernel(x_ref, pe_ref, o_ref):
    # x_ref/o_ref: (tB, tR, 128) or (tB, tF); pe_ref: (1, tR, 128) or (1, tF), f32.
    # Add happens in (at least) f32, cast to the output dtype afterwards.
    o_ref[...] = (x_ref[...] + pe_ref[...]).astype(o_ref.dtype)


def _vmem_limit(x_tile_bytes: int, pe_tile_bytes: int) -> int:
    needed = 2 * (2 * x_tile_bytes + pe_tile_bytes)   # double-buffered x + out + pe
    return int(min(48 * 1024 * 1024,
                   max(24 * 1024 * 1024, needed + _VMEM_HEADROOM_BYTES)))


def _semantics(n_axes: int, tag: str):
    if tag == "core_parallel":
        return (_CORE_PARALLEL,) + (_ARBITRARY,) * (n_axes - 1)
    return ("parallel",) * n_axes


@functools.lru_cache(maxsize=None)
def _build_call_3d(B, R, dtype_name, tB, tR, tag):
    dtype = jnp.dtype(dtype_name)
    itemsize = dtype.itemsize
    grid = (pl.cdiv(R, tR), pl.cdiv(B, tB))   # flat axis outer -> pe fetched once per flat block
    x_tile_bytes = tB * tR * 128 * itemsize
    pe_tile_bytes = tR * 128 * 4
    return pl.pallas_call(
        _add_pe_kernel,
        out_shape=jax.ShapeDtypeStruct((B, R, 128), dtype),
        grid_spec=pltpu.PrefetchScalarGridSpec(
            num_scalar_prefetch=0,
            grid=grid,
            in_specs=[
                pl.BlockSpec((tB, tR, 128), lambda f, b: (b, f, 0)),
                pl.BlockSpec((1, tR, 128), lambda f, b: (0, f, 0)),
            ],
            out_specs=pl.BlockSpec((tB, tR, 128), lambda f, b: (b, f, 0)),
        ),
        compiler_params=pltpu.CompilerParams(
            dimension_semantics=_semantics(2, tag),
            vmem_limit_bytes=_vmem_limit(x_tile_bytes, pe_tile_bytes),
        ),
    )


@functools.lru_cache(maxsize=None)
def _build_call_2d(B, F, dtype_name, tF, tag):
    # Fallback layout when S*D is not a multiple of 128 (full-batch blocks only).
    dtype = jnp.dtype(dtype_name)
    itemsize = dtype.itemsize
    grid = (pl.cdiv(F, tF),)
    x_tile_bytes = B * tF * itemsize
    pe_tile_bytes = tF * 4
    return pl.pallas_call(
        _add_pe_kernel,
        out_shape=jax.ShapeDtypeStruct((B, F), dtype),
        grid_spec=pltpu.PrefetchScalarGridSpec(
            num_scalar_prefetch=0,
            grid=grid,
            in_specs=[
                pl.BlockSpec((B, tF), lambda f: (0, f)),
                pl.BlockSpec((1, tF), lambda f: (0, f)),
            ],
            out_specs=pl.BlockSpec((B, tF), lambda f: (0, f)),
        ),
        compiler_params=pltpu.CompilerParams(
            dimension_semantics=_semantics(1, tag),
            vmem_limit_bytes=_vmem_limit(x_tile_bytes, pe_tile_bytes),
        ),
    )


def _choose_tiles_3d(B, R, itemsize):
    """Pick (tB, tR) for the (B, R, 128) layout."""
    F = R * 128
    tF_cap = max(_TF_FLOOR_ELEMS, _PE_TILE_CAP_BYTES // 4)          # pe kept f32
    tF_target = _X_TILE_TARGET_BYTES // max(B * itemsize, 1)
    tF = min(tF_cap, max(tF_target, _TF_FLOOR_ELEMS))
    if tF >= F:
        tR = R                                                       # full flat extent
    else:
        tR = max(8, (tF // 1024) * 8)                                # multiple of 8 sublanes
    tF_actual = tR * 128
    tB = min(B, max(1, _X_TILE_TARGET_BYTES // (tF_actual * itemsize)))
    return tB, tR


def _choose_tile_2d(B, F, itemsize):
    tF_cap = max(512, _PE_TILE_CAP_BYTES // 4)
    tF_target = _X_TILE_TARGET_BYTES // max(B * itemsize, 1)
    tF = min(tF_cap, max(tF_target, 512))
    if tF >= F:
        return F
    return max(128, (tF // 128) * 128)


@functools.lru_cache(maxsize=1)
def _is_multicore_chip() -> bool:
    try:
        kind = jax.devices()[0].device_kind.lower()
    except Exception:
        return False
    return ("v7" in kind) or ("7x" in kind)


class PallasPositionalEncoding:
    """Pallas TPU equivalent of the PyTorch PositionalEncoding module (forward pass)."""

    def __init__(self, d_model: int, max_len: int = 5000):
        self.d_model = d_model
        self.max_len = max_len
        self.pe = _build_pe_table(d_model, max_len)   # f32 [max_len, d_model]
        self._pe_cache = {}                           # (S, use_3d) -> prepared pe operand
        self._core_parallel_ok = None                 # None=unknown, False=rejected

    def _prepared_pe(self, S, use_3d, flat_dim):
        key = (S, use_3d)
        if key not in self._pe_cache:
            pe_slice = self.pe[:S, :]                 # stays f32 (cast after the add)
            if use_3d:
                self._pe_cache[key] = pe_slice.reshape(1, flat_dim, 128)
            else:
                self._pe_cache[key] = pe_slice.reshape(1, flat_dim)
        return self._pe_cache[key]

    def _semantics_options(self, n_flat):
        opts = []
        if (_CORE_PARALLEL is not None and n_flat >= 2
                and self._core_parallel_ok is not False and _is_multicore_chip()):
            opts.append("core_parallel")
        opts.append("parallel")
        return opts

    def __call__(self, x: jnp.ndarray) -> jnp.ndarray:
        B, S, D = x.shape
        if S > self.max_len or D != self.d_model:
            raise ValueError("input incompatible with positional-encoding table")
        F = S * D
        itemsize = jnp.dtype(x.dtype).itemsize
        dtype_name = jnp.dtype(x.dtype).name
        use_3d = (F % 128 == 0)

        if use_3d:
            R = F // 128
            tB, tR = _choose_tiles_3d(B, R, itemsize)
            pe_op = self._prepared_pe(S, True, R)
            x_op = x.reshape(B, R, 128)
            n_flat = pl.cdiv(R, tR)
            build = lambda tag: _build_call_3d(B, R, dtype_name, tB, tR, tag)
        else:
            tF = _choose_tile_2d(B, F, itemsize)
            pe_op = self._prepared_pe(S, False, F)
            x_op = x.reshape(B, F)
            n_flat = pl.cdiv(F, tF)
            build = lambda tag: _build_call_2d(B, F, dtype_name, tF, tag)

        tags = self._semantics_options(n_flat)
        out = None
        for idx, tag in enumerate(tags):
            try:
                out = build(tag)(x_op, pe_op)
                if tag == "core_parallel":
                    self._core_parallel_ok = True
                break
            except Exception:
                if tag == "core_parallel":
                    self._core_parallel_ok = False
                if idx == len(tags) - 1:
                    raise
        return out.reshape(B, S, D)

    # TODO(synk): the canonical transformer PositionalEncoding sometimes applies dropout
    # after x + pe; this spec's module has none, so none is implemented here.


if __name__ == "__main__":
    # 1) Small shapes matching the module (batch=2, seq=8, hidden=32), 3-D layout, single tile.
    batch, seq_len, d_model = 2, 8, 32
    x = jax.random.normal(jax.random.PRNGKey(0), (batch, seq_len, d_model), dtype=jnp.float32)
    posenc = PallasPositionalEncoding(d_model, max_len=5000)
    out = jax.block_until_ready(posenc(x))
    ref = x + posenc.pe[None, :seq_len, :]
    assert out.shape == (batch, seq_len, d_model)
    assert jnp.allclose(out, ref, atol=1e-6, rtol=1e-6), "mismatch vs reference (small)"

    # 2) Multi-tile grid with a padded tail block on the flat axis; repeat call hits the caches.
    b2, s2, d2 = 2, 640, 1024
    x2 = jax.random.normal(jax.random.PRNGKey(1), (b2, s2, d2), dtype=jnp.float32)
    posenc2 = PallasPositionalEncoding(d2, max_len=s2)
    out2 = jax.block_until_ready(posenc2(x2))
    out2b = jax.block_until_ready(posenc2(x2))
    ref2 = x2 + posenc2.pe[None, :s2, :]
    assert jnp.allclose(out2, ref2, atol=1e-6, rtol=1e-6), "mismatch vs reference (tiled)"
    assert jnp.allclose(out2b, ref2, atol=1e-6, rtol=1e-6), "mismatch vs reference (cached)"

    # 3) 2-D fallback layout (S*D not a multiple of 128).
    b3, s3, d3 = 2, 5, 24
    x3 = jax.random.normal(jax.random.PRNGKey(2), (b3, s3, d3), dtype=jnp.float32)
    posenc3 = PallasPositionalEncoding(d3, max_len=16)
    out3 = jax.block_until_ready(posenc3(x3))
    ref3 = x3 + posenc3.pe[None, :s3, :]
    assert jnp.allclose(out3, ref3, atol=1e-6, rtol=1e-6), "mismatch vs reference (fallback)"

    print("KERNEL_OK")
</pallas_src>

<mosaic_0001>
module attributes {stable_mosaic.version = 11 : i64} {
  func.func @_add_pe_kernel(%arg0: i32, %arg1: i32, %arg2: memref<2x2x128xf32, #tpu.memory_space<vmem>>, %arg3: memref<1x2x128xf32, #tpu.memory_space<vmem>>, %arg4: memref<2x2x128xf32, #tpu.memory_space<vmem>>) attributes {dimension_semantics = [#tpu.dimension_semantics<parallel>, #tpu.dimension_semantics<parallel>], iteration_bounds = array<i64: 1, 1>, scalar_prefetch = 0 : i64, scratch_operands = 0 : i64, tpu.core_type = #tpu.core_type<tc>, window_params = [{transform_indices = @transform_0, window_bounds = array<i64: 2, 2, 128>}, {transform_indices = @transform_1, window_bounds = array<i64: 1, 2, 128>}, {transform_indices = @transform_2, window_bounds = array<i64: 2, 2, 128>}]} {
    %c0 = arith.constant 0 : index
    %c0_0 = arith.constant 0 : index
    %c0_1 = arith.constant 0 : index
    %0 = vector.load %arg2[%c0, %c0_0, %c0_1] : memref<2x2x128xf32, #tpu.memory_space<vmem>>, vector<2x2x128xf32>
    %c0_2 = arith.constant 0 : index
    %c0_3 = arith.constant 0 : index
    %c0_4 = arith.constant 0 : index
    %1 = vector.load %arg3[%c0_2, %c0_3, %c0_4] : memref<1x2x128xf32, #tpu.memory_space<vmem>>, vector<1x2x128xf32>
    %2 = vector.broadcast %1 : vector<1x2x128xf32> to vector<2x2x128xf32>
    %3 = arith.addf %0, %2 : vector<2x2x128xf32>
    %c0_5 = arith.constant 0 : index
    %c0_6 = arith.constant 0 : index
    %c0_7 = arith.constant 0 : index
    %4 = vector.load %arg4[%c0_5, %c0_6, %c0_7] : memref<2x2x128xf32, #tpu.memory_space<vmem>>, vector<2x2x128xf32>
    tpu.vector_store %arg4[%c0_5, %c0_6, %c0_7], %3 {strides = array<i32>} : memref<2x2x128xf32, #tpu.memory_space<vmem>>, vector<2x2x128xf32>,
    return
  }
  func.func @transform_0(%arg0: i32, %arg1: i32) -> (i32, i32, i32) {
    %c0_i32 = arith.constant 0 : i32
    %c0_i32_0 = arith.constant 0 : i32
    return %arg1, %arg0, %c0_i32 : i32, i32, i32
  }
  func.func @transform_1(%arg0: i32, %arg1: i32) -> (i32, i32, i32) {
    %c0_i32 = arith.constant 0 : i32
    %c0_i32_0 = arith.constant 0 : i32
    %c0_i32_1 = arith.constant 0 : i32
    return %c0_i32, %arg0, %c0_i32_0 : i32, i32, i32
  }
  func.func @transform_2(%arg0: i32, %arg1: i32) -> (i32, i32, i32) {
    %c0_i32 = arith.constant 0 : i32
    %c0_i32_0 = arith.constant 0 : i32
    return %arg1, %arg0, %c0_i32 : i32, i32, i32
  }
}

</mosaic_0001>

<llo_original>
// kernel: tpu_custom_call.1
$region0: #{tpu_custom_call.1}
  #allocation0 [shape = 'u32[]', space=smem, size = 0x4, offset = 0x4, fixed_abs, tag = 'smem constant byte address 0x4 - core index']
  #allocation1 [shape = 'u32[72,128]{1,0:T(1,128)}', space=vmem, size = 0x9000, scoped, tag = 'internal scratch']
  %s0 = inlined_call_operand.hbm [shape: f32[2,2,128], index: 0, kind: input, shape index: {}]
  %s1 = inlined_call_operand.hbm [shape: f32[1,2,128], index: 1, kind: input, shape index: {}]
  %s2 = inlined_call_operand.hbm [shape: f32[2,2,128], index: 2, kind: output, shape index: {}]
  %s3 = sld [smem:[#allocation0]]
  $region26: #{tpu_custom_call.1} parent=0
    _
  %s5 = ssub.s32 1, %s3
  %s6 = scalar_select 0, %s5, %s3
  $region1: #{tpu_custom_call.1} parent=0
    #allocation2 [shape = 'u8[2048]{0}', space=vmem, size = 0x800, scoped, tag = 'input window, operand 0, single buffered']
    #allocation3 [shape = 's32[1]{0}', space=sflag, size = 0x4, scoped, tag = 'scoped memory for tpu_custom_call.1']
    #allocation4 [shape = 's32[1]{0}', space=sflag, size = 0x4, scoped, tag = 'scoped memory for tpu_custom_call.1']
    #allocation5 [shape = 'u8[1024]{0}', space=vmem, size = 0x400, scoped, tag = 'input window, operand 1, single buffered']
    #allocation6 [shape = 's32[1]{0}', space=sflag, size = 0x4, scoped, tag = 'scoped memory for tpu_custom_call.1']
    #allocation7 [shape = 'u8[2048]{0}', space=vmem, size = 0x800, scoped, tag = 'output window, operand 0, single buffered']
    %7 = vsyncpa [#allocation3], 0
    %8 = vsyncpa [#allocation6], 0
    %9 = vsyncpa [#allocation4], 0
    // Predicated region
    $region2: #{tpu_custom_call.1} parent=1 // pred_check
      _
    $region3: #{tpu_custom_call.1} parent=1 // pred_check_branch
      %11 = sbr.rel (0) target = $region5
    $region4: #{tpu_custom_call.1} parent=1 // pred_region
      %13 = vsyncadd [#allocation3], 0
      %s14 = sshll.u32 %s0, 4
      %s15 = int_to_ptr.hbm [resolvable:$true] %s14
      %s16 = sshll.u32 [#allocation2], 4
      %s17 = int_to_ptr.vmem [resolvable:$true] %s16
      %22 = dma.hbm_to_vmem [thread:$0]  %s15, 64, %s17, [#allocation3], 32, 32, 2
    $region5: #{tpu_custom_call.1} parent=1 // pred_fallthru
      _
    // Predicated region
    $region6: #{tpu_custom_call.1} parent=1 // pred_check
      _
    $region7: #{tpu_custom_call.1} parent=1 // pred_check_branch
      %24 = sbr.rel (0) target = $region9
    $region8: #{tpu_custom_call.1} parent=1 // pred_region
      %26 = vsyncadd [#allocation6], 0
      %s28 = sshll.u32 %s1, 4
      %s29 = int_to_ptr.hbm [resolvable:$true] %s28
      %s30 = sshll.u32 [#allocation5], 4
      %s31 = int_to_ptr.vmem [resolvable:$true] %s30
      %33 = dma.hbm_to_vmem [thread:$0]  %s29, 32, %s31, [#allocation6]
    $region9: #{tpu_custom_call.1} parent=1 // pred_fallthru
      _
    // Predicated region
    $region10: #{tpu_custom_call.1} parent=1 // pred_check
      _
    $region11: #{tpu_custom_call.1} parent=1 // pred_check_branch
      %35 = sbr.rel (0) target = $region13
    $region12: #{tpu_custom_call.1} parent=1 // pred_region
      %37 = dma.done [#allocation3], 64
    $region13: #{tpu_custom_call.1} parent=1 // pred_fallthru
      _
    // Predicated region
    $region14: #{tpu_custom_call.1} parent=1 // pred_check
      _
    $region15: #{tpu_custom_call.1} parent=1 // pred_check_branch
      %39 = sbr.rel (0) target = $region17
    $region16: #{tpu_custom_call.1} parent=1 // pred_region
      %41 = dma.done [#allocation6], 32
    $region17: #{tpu_custom_call.1} parent=1 // pred_fallthru
      _
    %v42 = vld [vmem:[#allocation2] sm:$0x3]
    %v43 = vld [vmem:[#allocation2 + $0x2] sm:$0x3]
    %v44 = vld [vmem:[#allocation5] sm:$0x3]
    %v45 = vadd.f32 %v42, %v44
    %v46 = vadd.f32 %v43, %v44
    %47 = vst [vmem:[#allocation7] sm:$0x3] %v45
    %48 = vst [vmem:[#allocation7 + $0x2] sm:$0x3] %v46
    // Predicated region
    $region18: #{tpu_custom_call.1} parent=1 // pred_check
      _
    $region19: #{tpu_custom_call.1} parent=1 // pred_check_branch
      %50 = sbr.rel (0) target = $region21
    $region20: #{tpu_custom_call.1} parent=1 // pred_region
      %52 = vsyncadd [#allocation4], 0
      %s53 = sshll.u32 [#allocation7], 4
      %s54 = int_to_ptr.vmem [resolvable:$true] %s53
      %s55 = sshll.u32 %s2, 4
      %s56 = int_to_ptr.hbm [resolvable:$true] %s55
      %61 = dma.vmem_to_hbm [thread:$0]  %s54, 64, %s56, [#allocation4], 32, 32, 2
    $region21: #{tpu_custom_call.1} parent=1 // pred_fallthru
      _
    // Predicated region
    $region22: #{tpu_custom_call.1} parent=1 // pred_check
      _
    $region23: #{tpu_custom_call.1} parent=1 // pred_check_branch
      %63 = sbr.rel (0) target = $region25
    $region24: #{tpu_custom_call.1} parent=1 // pred_region
      %65 = dma.done [#allocation4], 64
    $region25: #{tpu_custom_call.1} parent=1 // pred_fallthru
      _
    %66 = vsyncpa [#allocation3], 1
    %67 = vsyncpa [#allocation6], 1
    %68 = vsyncpa [#allocation4], 1

</llo_original>
